<compile_context>
chip_gen: v7x
topology: tpu7x:2x2x1
jax: 0.10.0
libtpu: 0.0.40
codegen_flags: <defaults>
</compile_context>

<pallas_src>
import jax
import jax.numpy as jnp
from jax.experimental import pallas as pl
from jax.experimental.pallas import tpu as pltpu

INPUT_SIZE = 2
HIDDEN_SIZE = 5
OUTPUT_SIZE = 1

# packed-parameter layout (flat f32 vector in SMEM, padded to PARAM_LEN):
#   [0 : 5)   w1[0, :]   (input feature 0 -> each hidden unit)
#   [5 : 10)  w1[1, :]   (input feature 1 -> each hidden unit)
#   [10: 15)  b1
#   [15: 20)  w2[:, 0]
#   [20]      b2
PARAM_COUNT = (INPUT_SIZE * HIDDEN_SIZE + HIDDEN_SIZE
               + HIDDEN_SIZE * OUTPUT_SIZE + OUTPUT_SIZE)
PARAM_LEN = 32
LANES = 128


def mlp_kernel(p_ref, x_ref, o_ref):
    # x_ref: (INPUT_SIZE, TB) VMEM tile, batch on lanes (lane-dense)
    # p_ref: (PARAM_LEN,) f32 in SMEM, read as scalars
    # o_ref: (1, TB) lane-dense output tile
    x0 = x_ref[0:1, :]            # (1, TB)
    x1 = x_ref[1:2, :]            # (1, TB)

    # start z2 accumulator with the scalar bias b2 (fused as immediate)
    z2 = jnp.full_like(x0, p_ref[4 * HIDDEN_SIZE])

    # fully unrolled hidden layer + second-layer contraction on the VPU
    for h in range(HIDDEN_SIZE):
        z1_h = (x0 * p_ref[h]
                + x1 * p_ref[HIDDEN_SIZE + h]
                + p_ref[2 * HIDDEN_SIZE + h])          # (1, TB)
        a1_h = jax.nn.sigmoid(z1_h)                    # EUP, f32
        z2 = z2 + a1_h * p_ref[3 * HIDDEN_SIZE + h]

    o_ref[...] = jax.nn.sigmoid(z2).astype(o_ref.dtype)


def pack_params(w1, b1, w2, b2):
    """Pack (w1 (2,5), b1 (5,), w2 (5,1), b2 (1,)) into one f32 SMEM vector."""
    flat = jnp.concatenate([
        jnp.asarray(w1, jnp.float32).reshape(-1),   # row-major -> [w1[0,:], w1[1,:]]
        jnp.asarray(b1, jnp.float32).reshape(-1),
        jnp.asarray(w2, jnp.float32).reshape(-1),
        jnp.asarray(b2, jnp.float32).reshape(-1),
    ])
    return jnp.pad(flat, (0, PARAM_LEN - flat.shape[0]))


def mlp_forward(x, w1, b1, w2, b2, *, max_block_b=2048):
    """x: (B, INPUT_SIZE) -> (B, OUTPUT_SIZE), all f32."""
    batch = x.shape[0]
    params = pack_params(w1, b1, w2, b2)

    # lane-dense plumbing: batch on the lane axis.
    xt = jnp.asarray(x, jnp.float32).T                       # (INPUT_SIZE, B)

    # adaptive blocking: single step for small batches, 2048-lane tiles otherwise
    lane_b = pl.cdiv(batch, LANES) * LANES
    if lane_b <= max_block_b:
        block_b = lane_b
        padded_b = lane_b
    else:
        block_b = max_block_b
        padded_b = pl.cdiv(batch, max_block_b) * max_block_b
    if padded_b != batch:
        xt = jnp.pad(xt, ((0, 0), (0, padded_b - batch)))

    grid = (padded_b // block_b,)
    out_t = pl.pallas_call(
        mlp_kernel,
        out_shape=jax.ShapeDtypeStruct((1, padded_b), jnp.float32),
        grid_spec=pltpu.PrefetchScalarGridSpec(
            num_scalar_prefetch=0,
            grid=grid,
            in_specs=[
                # single packed parameter vector, whole array in SMEM (no tiling)
                pl.BlockSpec(memory_space=pltpu.MemorySpace.SMEM),
                # x^T tile: sublane dim == full extent (2), lane dim = block_b (mult. of 128)
                pl.BlockSpec((INPUT_SIZE, block_b), lambda i: (0, i)),
            ],
            # lane-dense output slab: (1, block_b) unmasked stores
            out_specs=pl.BlockSpec((1, block_b), lambda i: (0, i)),
        ),
        compiler_params=pltpu.CompilerParams(
            dimension_semantics=("parallel",),
        ),
    )(params, xt)

    return out_t[0, :batch].reshape(batch, OUTPUT_SIZE)


def init_params():
    # constant_(weight, 0.0) / constant_(bias, 0.0) from the PyTorch module.
    # Weights stored as (in_features, out_features) == PyTorch weight transposed.
    w1 = jnp.zeros((INPUT_SIZE, HIDDEN_SIZE), jnp.float32)
    b1 = jnp.zeros((HIDDEN_SIZE,), jnp.float32)
    w2 = jnp.zeros((HIDDEN_SIZE, OUTPUT_SIZE), jnp.float32)
    b2 = jnp.zeros((OUTPUT_SIZE,), jnp.float32)
    return w1, b1, w2, b2


def ref_forward(x, w1, b1, w2, b2):
    a1 = jax.nn.sigmoid(x @ w1 + b1)
    return jax.nn.sigmoid(a1 @ w2 + b2)


if __name__ == "__main__":
    key = jax.random.PRNGKey(0)
    kx, kw1, kb1, kw2, kb2 = jax.random.split(key, 5)

    batch = 200   # small, not a multiple of 128 -> exercises lane padding
    x = jax.random.normal(kx, (batch, INPUT_SIZE), dtype=jnp.float32)

    # 1) module-faithful zero-initialized parameters (PyTorch constant_(0.0))
    w1, b1, w2, b2 = init_params()
    out = jax.block_until_ready(mlp_forward(x, w1, b1, w2, b2))
    assert out.shape == (batch, OUTPUT_SIZE), out.shape
    assert jnp.allclose(out, ref_forward(x, w1, b1, w2, b2), atol=1e-6)
    # With zero-initialized params every output is sigmoid(sigmoid(0)*0 + 0) = 0.5.
    assert jnp.allclose(out, 0.5, atol=1e-6)

    # 2) random-parameter sanity check of the fused VPU math (same forward semantics)
    w1r = jax.random.normal(kw1, (INPUT_SIZE, HIDDEN_SIZE), jnp.float32)
    b1r = jax.random.normal(kb1, (HIDDEN_SIZE,), jnp.float32)
    w2r = jax.random.normal(kw2, (HIDDEN_SIZE, OUTPUT_SIZE), jnp.float32)
    b2r = jax.random.normal(kb2, (OUTPUT_SIZE,), jnp.float32)
    out_r = jax.block_until_ready(mlp_forward(x, w1r, b1r, w2r, b2r))
    ref_r = ref_forward(x, w1r, b1r, w2r, b2r)
    assert jnp.allclose(out_r, ref_r, atol=1e-5), float(jnp.max(jnp.abs(out_r - ref_r)))

    # 3) multi-block path (batch > max_block_b) to exercise the grid pipeline
    big = 4100
    xb = jax.random.normal(kx, (big, INPUT_SIZE), dtype=jnp.float32)
    out_b = jax.block_until_ready(mlp_forward(xb, w1r, b1r, w2r, b2r))
    assert jnp.allclose(out_b, ref_forward(xb, w1r, b1r, w2r, b2r), atol=1e-5)

    print("KERNEL_OK")
</pallas_src>

<mosaic_0001>
module attributes {stable_mosaic.version = 11 : i64} {
  func.func @mlp_kernel(%arg0: i32, %arg1: memref<32xf32, #tpu.memory_space<smem>>, %arg2: memref<2x256xf32, #tpu.memory_space<vmem>>, %arg3: memref<1x256xf32, #tpu.memory_space<vmem>>) attributes {dimension_semantics = [#tpu.dimension_semantics<parallel>], iteration_bounds = array<i64: 1>, scalar_prefetch = 0 : i64, scratch_operands = 0 : i64, tpu.core_type = #tpu.core_type<tc>, window_params = [{transform_indices = @transform_0, window_bounds = array<i64: 32>}, {transform_indices = @transform_1, window_bounds = array<i64: 2, 256>}, {transform_indices = @transform_2, window_bounds = array<i64: 1, 256>}]} {
    %c0 = arith.constant 0 : index
    %c0_0 = arith.constant 0 : index
    %0 = vector.load %arg2[%c0, %c0_0] : memref<2x256xf32, #tpu.memory_space<vmem>>, vector<1x256xf32>
    %c1 = arith.constant 1 : index
    %c0_1 = arith.constant 0 : index
    %1 = vector.load %arg2[%c1, %c0_1] : memref<2x256xf32, #tpu.memory_space<vmem>>, vector<1x256xf32>
    %c20 = arith.constant 20 : index
    %2 = memref.load %arg1[%c20] : memref<32xf32, #tpu.memory_space<smem>>
    %3 = vector.broadcast %2 : f32 to vector<1x256xf32>
    %c0_2 = arith.constant 0 : index
    %4 = memref.load %arg1[%c0_2] : memref<32xf32, #tpu.memory_space<smem>>
    %5 = vector.broadcast %4 : f32 to vector<1x256xf32>
    %6 = arith.mulf %0, %5 : vector<1x256xf32>
    %c5 = arith.constant 5 : index
    %7 = memref.load %arg1[%c5] : memref<32xf32, #tpu.memory_space<smem>>
    %8 = vector.broadcast %7 : f32 to vector<1x256xf32>
    %9 = arith.mulf %1, %8 : vector<1x256xf32>
    %10 = arith.addf %6, %9 : vector<1x256xf32>
    %c10 = arith.constant 10 : index
    %11 = memref.load %arg1[%c10] : memref<32xf32, #tpu.memory_space<smem>>
    %12 = vector.broadcast %11 : f32 to vector<1x256xf32>
    %13 = arith.addf %10, %12 : vector<1x256xf32>
    %14 = arith.negf %13 : vector<1x256xf32>
    %15 = math.exp %14 : vector<1x256xf32>
    %cst = arith.constant 1.000000e+00 : f32
    %16 = vector.broadcast %cst : f32 to vector<1x256xf32>
    %17 = arith.addf %16, %15 : vector<1x256xf32>
    %18 = arith.divf %16, %17 : vector<1x256xf32>
    %c15 = arith.constant 15 : index
    %19 = memref.load %arg1[%c15] : memref<32xf32, #tpu.memory_space<smem>>
    %20 = vector.broadcast %19 : f32 to vector<1x256xf32>
    %21 = arith.mulf %18, %20 : vector<1x256xf32>
    %22 = arith.addf %3, %21 : vector<1x256xf32>
    %c1_3 = arith.constant 1 : index
    %23 = memref.load %arg1[%c1_3] : memref<32xf32, #tpu.memory_space<smem>>
    %24 = vector.broadcast %23 : f32 to vector<1x256xf32>
    %25 = arith.mulf %0, %24 : vector<1x256xf32>
    %c6 = arith.constant 6 : index
    %26 = memref.load %arg1[%c6] : memref<32xf32, #tpu.memory_space<smem>>
    %27 = vector.broadcast %26 : f32 to vector<1x256xf32>
    %28 = arith.mulf %1, %27 : vector<1x256xf32>
    %29 = arith.addf %25, %28 : vector<1x256xf32>
    %c11 = arith.constant 11 : index
    %30 = memref.load %arg1[%c11] : memref<32xf32, #tpu.memory_space<smem>>
    %31 = vector.broadcast %30 : f32 to vector<1x256xf32>
    %32 = arith.addf %29, %31 : vector<1x256xf32>
    %33 = arith.negf %32 : vector<1x256xf32>
    %34 = math.exp %33 : vector<1x256xf32>
    %cst_4 = arith.constant 1.000000e+00 : f32
    %35 = vector.broadcast %cst_4 : f32 to vector<1x256xf32>
    %36 = arith.addf %35, %34 : vector<1x256xf32>
    %37 = arith.divf %35, %36 : vector<1x256xf32>
    %c16 = arith.constant 16 : index
    %38 = memref.load %arg1[%c16] : memref<32xf32, #tpu.memory_space<smem>>
    %39 = vector.broadcast %38 : f32 to vector<1x256xf32>
    %40 = arith.mulf %37, %39 : vector<1x256xf32>
    %41 = arith.addf %22, %40 : vector<1x256xf32>
    %c2 = arith.constant 2 : index
    %42 = memref.load %arg1[%c2] : memref<32xf32, #tpu.memory_space<smem>>
    %43 = vector.broadcast %42 : f32 to vector<1x256xf32>
    %44 = arith.mulf %0, %43 : vector<1x256xf32>
    %c7 = arith.constant 7 : index
    %45 = memref.load %arg1[%c7] : memref<32xf32, #tpu.memory_space<smem>>
    %46 = vector.broadcast %45 : f32 to vector<1x256xf32>
    %47 = arith.mulf %1, %46 : vector<1x256xf32>
    %48 = arith.addf %44, %47 : vector<1x256xf32>
    %c12 = arith.constant 12 : index
    %49 = memref.load %arg1[%c12] : memref<32xf32, #tpu.memory_space<smem>>
    %50 = vector.broadcast %49 : f32 to vector<1x256xf32>
    %51 = arith.addf %48, %50 : vector<1x256xf32>
    %52 = arith.negf %51 : vector<1x256xf32>
    %53 = math.exp %52 : vector<1x256xf32>
    %cst_5 = arith.constant 1.000000e+00 : f32
    %54 = vector.broadcast %cst_5 : f32 to vector<1x256xf32>
    %55 = arith.addf %54, %53 : vector<1x256xf32>
    %56 = arith.divf %54, %55 : vector<1x256xf32>
    %c17 = arith.constant 17 : index
    %57 = memref.load %arg1[%c17] : memref<32xf32, #tpu.memory_space<smem>>
    %58 = vector.broadcast %57 : f32 to vector<1x256xf32>
    %59 = arith.mulf %56, %58 : vector<1x256xf32>
    %60 = arith.addf %41, %59 : vector<1x256xf32>
    %c3 = arith.constant 3 : index
    %61 = memref.load %arg1[%c3] : memref<32xf32, #tpu.memory_space<smem>>
    %62 = vector.broadcast %61 : f32 to vector<1x256xf32>
    %63 = arith.mulf %0, %62 : vector<1x256xf32>
    %c8 = arith.constant 8 : index
    %64 = memref.load %arg1[%c8] : memref<32xf32, #tpu.memory_space<smem>>
    %65 = vector.broadcast %64 : f32 to vector<1x256xf32>
    %66 = arith.mulf %1, %65 : vector<1x256xf32>
    %67 = arith.addf %63, %66 : vector<1x256xf32>
    %c13 = arith.constant 13 : index
    %68 = memref.load %arg1[%c13] : memref<32xf32, #tpu.memory_space<smem>>
    %69 = vector.broadcast %68 : f32 to vector<1x256xf32>
    %70 = arith.addf %67, %69 : vector<1x256xf32>
    %71 = arith.negf %70 : vector<1x256xf32>
    %72 = math.exp %71 : vector<1x256xf32>
    %cst_6 = arith.constant 1.000000e+00 : f32
    %73 = vector.broadcast %cst_6 : f32 to vector<1x256xf32>
    %74 = arith.addf %73, %72 : vector<1x256xf32>
    %75 = arith.divf %73, %74 : vector<1x256xf32>
    %c18 = arith.constant 18 : index
    %76 = memref.load %arg1[%c18] : memref<32xf32, #tpu.memory_space<smem>>
    %77 = vector.broadcast %76 : f32 to vector<1x256xf32>
    %78 = arith.mulf %75, %77 : vector<1x256xf32>
    %79 = arith.addf %60, %78 : vector<1x256xf32>
    %c4 = arith.constant 4 : index
    %80 = memref.load %arg1[%c4] : memref<32xf32, #tpu.memory_space<smem>>
    %81 = vector.broadcast %80 : f32 to vector<1x256xf32>
    %82 = arith.mulf %0, %81 : vector<1x256xf32>
    %c9 = arith.constant 9 : index
    %83 = memref.load %arg1[%c9] : memref<32xf32, #tpu.memory_space<smem>>
    %84 = vector.broadcast %83 : f32 to vector<1x256xf32>
    %85 = arith.mulf %1, %84 : vector<1x256xf32>
    %86 = arith.addf %82, %85 : vector<1x256xf32>
    %c14 = arith.constant 14 : index
    %87 = memref.load %arg1[%c14] : memref<32xf32, #tpu.memory_space<smem>>
    %88 = vector.broadcast %87 : f32 to vector<1x256xf32>
    %89 = arith.addf %86, %88 : vector<1x256xf32>
    %90 = arith.negf %89 : vector<1x256xf32>
    %91 = math.exp %90 : vector<1x256xf32>
    %cst_7 = arith.constant 1.000000e+00 : f32
    %92 = vector.broadcast %cst_7 : f32 to vector<1x256xf32>
    %93 = arith.addf %92, %91 : vector<1x256xf32>
    %94 = arith.divf %92, %93 : vector<1x256xf32>
    %c19 = arith.constant 19 : index
    %95 = memref.load %arg1[%c19] : memref<32xf32, #tpu.memory_space<smem>>
    %96 = vector.broadcast %95 : f32 to vector<1x256xf32>
    %97 = arith.mulf %94, %96 : vector<1x256xf32>
    %98 = arith.addf %79, %97 : vector<1x256xf32>
    %99 = arith.negf %98 : vector<1x256xf32>
    %100 = math.exp %99 : vector<1x256xf32>
    %cst_8 = arith.constant 1.000000e+00 : f32
    %101 = vector.broadcast %cst_8 : f32 to vector<1x256xf32>
    %102 = arith.addf %101, %100 : vector<1x256xf32>
    %103 = arith.divf %101, %102 : vector<1x256xf32>
    %c0_9 = arith.constant 0 : index
    %c0_10 = arith.constant 0 : index
    %104 = vector.load %arg3[%c0_9, %c0_10] : memref<1x256xf32, #tpu.memory_space<vmem>>, vector<1x256xf32>
    tpu.vector_store %arg3[%c0_9, %c0_10], %103 {strides = array<i32>} : memref<1x256xf32, #tpu.memory_space<vmem>>, vector<1x256xf32>,
    return
  }
  func.func @transform_0(%arg0: i32) -> i32 {
    %c0_i32 = arith.constant 0 : i32
    %c0_i32_0 = arith.constant 0 : i32
    return %c0_i32 : i32
  }
  func.func @transform_1(%arg0: i32) -> (i32, i32) {
    %c0_i32 = arith.constant 0 : i32
    %c0_i32_0 = arith.constant 0 : i32
    return %c0_i32, %arg0 : i32, i32
  }
  func.func @transform_2(%arg0: i32) -> (i32, i32) {
    %c0_i32 = arith.constant 0 : i32
    %c0_i32_0 = arith.constant 0 : i32
    return %c0_i32, %arg0 : i32, i32
  }
}

</mosaic_0001>

<llo_original>
// kernel: tpu_custom_call.1
$region0: #{tpu_custom_call.1}
  #allocation0 [shape = 'u32[]', space=smem, size = 0x4, offset = 0x4, fixed_abs, tag = 'smem constant byte address 0x4 - core index']
  #allocation1 [shape = 'u32[144,128]{1,0:T(1,128)}', space=vmem, size = 0x12000, scoped, tag = 'internal scratch']
  %s0 = inlined_call_operand.hbm [shape: f32[32], index: 0, kind: input, shape index: {}]
  %s1 = inlined_call_operand.hbm [shape: f32[2,256], index: 1, kind: input, shape index: {}]
  %s2 = inlined_call_operand.hbm [shape: f32[1,256], index: 2, kind: output, shape index: {}]
  %s3 = sld [smem:[#allocation0]]
  $region26: #{tpu_custom_call.1} parent=0
    _
  %s5 = ssub.s32 1, %s3
  %s6 = scalar_select 0, %s5, %s3
  $region1: #{tpu_custom_call.1} parent=0
    #allocation2 [shape = 'u8[512]{0}', space=smem, size = 0x200, scoped, tag = 'input window, operand 0, single buffered']
    #allocation3 [shape = 's32[1]{0}', space=sflag, size = 0x4, scoped, tag = 'scoped memory for tpu_custom_call.1']
    #allocation4 [shape = 's32[1]{0}', space=sflag, size = 0x4, scoped, tag = 'scoped memory for tpu_custom_call.1']
    #allocation5 [shape = 's32[1]{0}', space=sflag, size = 0x4, scoped, tag = 'scoped memory for tpu_custom_call.1']
    #allocation6 [shape = 'u8[2048]{0}', space=vmem, size = 0x800, scoped, tag = 'input window, operand 1, single buffered']
    #allocation7 [shape = 'u8[1024]{0}', space=vmem, size = 0x400, scoped, tag = 'output window, operand 0, single buffered']
    %7 = vsyncpa [#allocation5], 0
    %8 = vsyncpa [#allocation3], 0
    %9 = vsyncpa [#allocation4], 0
    // Predicated region
    $region2: #{tpu_custom_call.1} parent=1 // pred_check
      _
    $region3: #{tpu_custom_call.1} parent=1 // pred_check_branch
      %11 = sbr.rel (0) target = $region5
    $region4: #{tpu_custom_call.1} parent=1 // pred_region
      %s13 = ssub.s32 16, 16
      %14 = vsyncadd [#allocation5], %s13
      %17 = dma.hbm_to_smem %s0, 16, [#allocation2], [#allocation5]
    $region5: #{tpu_custom_call.1} parent=1 // pred_fallthru
      _
    // Predicated region
    $region6: #{tpu_custom_call.1} parent=1 // pred_check
      _
    $region7: #{tpu_custom_call.1} parent=1 // pred_check_branch
      %19 = sbr.rel (0) target = $region9
    $region8: #{tpu_custom_call.1} parent=1 // pred_region
      %s21 = ssub.s32 64, 64
      %22 = vsyncadd [#allocation3], %s21
      %s24 = sshll.u32 [#allocation6], 4
      %s25 = int_to_ptr.vmem [resolvable:$true] %s24
      %27 = dma.hbm_to_vmem [thread:$0]  %s1, 64, %s25, [#allocation3]
    $region9: #{tpu_custom_call.1} parent=1 // pred_fallthru
      _
    // Predicated region
    $region10: #{tpu_custom_call.1} parent=1 // pred_check
      _
    $region11: #{tpu_custom_call.1} parent=1 // pred_check_branch
      %29 = sbr.rel (0) target = $region13
    $region12: #{tpu_custom_call.1} parent=1 // pred_region
      %30 = dma.done [#allocation5], 16
    $region13: #{tpu_custom_call.1} parent=1 // pred_fallthru
      _
    // Predicated region
    $region14: #{tpu_custom_call.1} parent=1 // pred_check
      _
    $region15: #{tpu_custom_call.1} parent=1 // pred_check_branch
      %32 = sbr.rel (0) target = $region17
    $region16: #{tpu_custom_call.1} parent=1 // pred_region
      %33 = dma.done [#allocation3], 64
    $region17: #{tpu_custom_call.1} parent=1 // pred_fallthru
      _
    %34 = sfence
    %v35 = vld [vmem:[#allocation6] ss:$2 sm:$0x3]
    %s36 = scalar_lea.vmem [#allocation6], 1
    %v37 = vld [vmem:[%s36] ss:$2 sm:$0x3]
    %s38 = sld [smem:[#allocation2 + $0x14]]
    %v39 = vstv %s38
    %s40 = sld [smem:[#allocation2]]
    %v41 = vstv %s40
    %v42 = vmul.f32 %v35, %v41
    %s43 = sld [smem:[#allocation2 + $0x5]]
    %v44 = vstv %s43
    %v45 = vmul.f32 %v37, %v44
    %v46 = vadd.f32 %v42, %v45
    %s47 = sld [smem:[#allocation2 + $0xa]]
    %v48 = vstv %s47
    %v49 = vadd.f32 %v46, %v48
    %v50 = vxor.u32 %v49, 2147483648
    %v51 = vmul.f32 %v50, 1.442695
    %v52 = vpow.pop %v51
    %v53 = vadd.f32 %v52, 1.0
    %v54 = vrcp.pop %v53
    %v55 = vmul.f32 1.0, %v54
    %s56 = sld [smem:[#allocation2 + $0xf]]
    %v57 = vstv %s56
    %v58 = vmul.f32 %v55, %v57
    %v59 = vadd.f32 %v39, %v58
    %s60 = sld [smem:[#allocation2 + $0x1]]
    %v61 = vstv %s60
    %v62 = vmul.f32 %v35, %v61
    %s63 = sld [smem:[#allocation2 + $0x6]]
    %v64 = vstv %s63
    %v65 = vmul.f32 %v37, %v64
    %v66 = vadd.f32 %v62, %v65
    %s67 = sld [smem:[#allocation2 + $0xb]]
    %v68 = vstv %s67
    %v69 = vadd.f32 %v66, %v68
    %v70 = vxor.u32 %v69, 2147483648
    %v71 = vmul.f32 %v70, 1.442695
    %v72 = vpow.pop %v71
    %v73 = vadd.f32 %v72, 1.0
    %v74 = vrcp.pop %v73
    %v75 = vmul.f32 1.0, %v74
    %s76 = sld [smem:[#allocation2 + $0x10]]
    %v77 = vstv %s76
    %v78 = vmul.f32 %v75, %v77
    %v79 = vadd.f32 %v59, %v78
    %s80 = sld [smem:[#allocation2 + $0x2]]
    %v81 = vstv %s80
    %v82 = vmul.f32 %v35, %v81
    %s83 = sld [smem:[#allocation2 + $0x7]]
    %v84 = vstv %s83
    %v85 = vmul.f32 %v37, %v84
    %v86 = vadd.f32 %v82, %v85
    %s87 = sld [smem:[#allocation2 + $0xc]]
    %v88 = vstv %s87
    %v89 = vadd.f32 %v86, %v88
    %v90 = vxor.u32 %v89, 2147483648
    %v91 = vmul.f32 %v90, 1.442695
    %v92 = vpow.pop %v91
    %v93 = vadd.f32 %v92, 1.0
    %v94 = vrcp.pop %v93
    %v95 = vmul.f32 1.0, %v94
    %s96 = sld [smem:[#allocation2 + $0x11]]
    %v97 = vstv %s96
    %v98 = vmul.f32 %v95, %v97
    %v99 = vadd.f32 %v79, %v98
    %s100 = sld [smem:[#allocation2 + $0x3]]
    %v101 = vstv %s100
    %v102 = vmul.f32 %v35, %v101
    %s103 = sld [smem:[#allocation2 + $0x8]]
    %v104 = vstv %s103
    %v105 = vmul.f32 %v37, %v104
    %v106 = vadd.f32 %v102, %v105
    %s107 = sld [smem:[#allocation2 + $0xd]]
    %v108 = vstv %s107
    %v109 = vadd.f32 %v106, %v108
    %v110 = vxor.u32 %v109, 2147483648
    %v111 = vmul.f32 %v110, 1.442695
    %v112 = vpow.pop %v111
    %v113 = vadd.f32 %v112, 1.0
    %v114 = vrcp.pop %v113
    %v115 = vmul.f32 1.0, %v114
    %s116 = sld [smem:[#allocation2 + $0x12]]
    %v117 = vstv %s116
    %v118 = vmul.f32 %v115, %v117
    %v119 = vadd.f32 %v99, %v118
    %s120 = sld [smem:[#allocation2 + $0x4]]
    %v121 = vstv %s120
    %v122 = vmul.f32 %v35, %v121
    %s123 = sld [smem:[#allocation2 + $0x9]]
    %v124 = vstv %s123
    %v125 = vmul.f32 %v37, %v124
    %v126 = vadd.f32 %v122, %v125
    %s127 = sld [smem:[#allocation2 + $0xe]]
    %v128 = vstv %s127
    %v129 = vadd.f32 %v126, %v128
    %v130 = vxor.u32 %v129, 2147483648
    %v131 = vmul.f32 %v130, 1.442695
    %v132 = vpow.pop %v131
    %v133 = vadd.f32 %v132, 1.0
    %v134 = vrcp.pop %v133
    %v135 = vmul.f32 1.0, %v134
    %s136 = sld [smem:[#allocation2 + $0x13]]
    %v137 = vstv %s136
    %v138 = vmul.f32 %v135, %v137
    %v139 = vadd.f32 %v119, %v138
    %v140 = vxor.u32 %v139, 2147483648
    %v141 = vmul.f32 %v140, 1.442695
    %v142 = vpow.pop %v141
    %v143 = vadd.f32 %v142, 1.0
    %v144 = vrcp.pop %v143
    %v145 = vmul.f32 1.0, %v144
    %v146 = vlaneseq
    %vm147 = vcmp.ge.s32.totalorder %v146, 0
    %vm148 = vcmp.lt.s32.totalorder %v146, 256
    %vm149 = vmand %vm147, %vm148
    %150 = vst.msk [vmem:[#allocation7] sm:$0x3] %vm149, %v145
    // Predicated region
    $region18: #{tpu_custom_call.1} parent=1 // pred_check
      _
    $region19: #{tpu_custom_call.1} parent=1 // pred_check_branch
      %152 = sbr.rel (0) target = $region21
    $region20: #{tpu_custom_call.1} parent=1 // pred_region
      %s154 = ssub.s32 32, 32
      %155 = vsyncadd [#allocation4], %s154
      %s157 = sshll.u32 [#allocation7], 4
      %s158 = int_to_ptr.vmem [resolvable:$true] %s157
      %160 = dma.vmem_to_hbm [thread:$0]  %s158, 32, %s2, [#allocation4]
    $region21: #{tpu_custom_call.1} parent=1 // pred_fallthru
      _
    // Predicated region
    $region22: #{tpu_custom_call.1} parent=1 // pred_check
      _
    $region23: #{tpu_custom_call.1} parent=1 // pred_check_branch
      %162 = sbr.rel (0) target = $region25
    $region24: #{tpu_custom_call.1} parent=1 // pred_region
      %163 = dma.done [#allocation4], 32
    $region25: #{tpu_custom_call.1} parent=1 // pred_fallthru
      _
    %164 = vsyncpa [#allocation3], 1
    %165 = vsyncpa [#allocation4], 1
    %166 = vsyncpa [#allocation5], 1

</llo_original>
